<compile_context>
chip_gen: v6e
topology: v6e:2x2x1
jax: 0.10.0
libtpu: 0.0.40
codegen_flags: <defaults>
</compile_context>

<pallas_src>
import math
from functools import partial

import numpy as np
import jax
import jax.numpy as jnp
from jax.experimental import pallas as pl
from jax.experimental.pallas import tpu as pltpu


# ---------------------------------------------------------------- helpers ---

def _round_up(n, m):
    return ((n + m - 1) // m) * m


def _default_vmem_limit_bytes():
    """Per-generation scoped-VMEM budget (3/4 of physical, clamped)."""
    try:
        info = pltpu.get_tpu_info()
        cap = getattr(info, "vmem_capacity_bytes", None)
        if cap:
            return int(min(112 * 2 ** 20, max(32 * 2 ** 20, (cap * 3) // 4)))
    except Exception:
        pass
    return 48 * 2 ** 20  # safe on v5e/v6e/v7x


def _auto_block_rows(d_model, vmem_limit_bytes):
    """Pick a row tile so resident bf16 weights + pipelined f32 row tiles +
    the f32 intermediates fit comfortably inside the scoped limit."""
    resident = 3 * d_model * d_model * 2 + 32 * d_model * 4   # W_a + W_proj (bf16) + small
    per_row = 56 * d_model      # 2x double-buffered f32 tiles + ~10 f32 (row,D) temps
    budget = int(vmem_limit_bytes * 0.5) - resident
    rows = budget // per_row if budget > per_row else 256
    return int(min(2048, max(256, rows)))


# ---------------------------------------------------------------- kernel ----

def _cont_fused_kernel(x_ref, wa_ref, ba_ref, wp_ref, bp_ref, m1_ref, m2_ref,
                       o_ref, *, inv_head_dim):
    """One row tile: fused [scale*(q-k)|v] projection + per-head content
    attention + output projection + residual."""
    x = x_ref[...]                              # (TM, D), input dtype
    d_model = x.shape[-1]
    xb = x.astype(jnp.bfloat16)                 # bf16 MXU inputs, f32 accumulation

    # Fused first projection: a = scale*(q-k), v.  One (TM,D)@(D,2D) matmul.
    av = jnp.dot(xb, wa_ref[...], preferred_element_type=jnp.float32)
    av = av + ba_ref[...]
    a = av[:, :d_model]                         # scale * (q - k)
    v = av[:, d_model:]

    m1 = m1_ref[...]                            # (D, Hp) 0/1 lane -> head
    m2 = m2_ref[...]                            # (Hp, D) 0/1 head -> lane

    # Per-head softmax over head_dim, lane-dense (softmax math kept in f32):
    #  * per-head mean shift (a per-head constant cancels -> exact) guards a
    #    head sitting far below the row-wide level,
    #  * row-global max shift guards exp() overflow,
    #  * per-head sums via two thin matmuls (2*D*Hp MACs, not D^2).
    mean_h = jnp.dot(a, m1, preferred_element_type=jnp.float32) * inv_head_dim
    a = a - jnp.dot(mean_h, m2, preferred_element_type=jnp.float32)
    a = a - jnp.max(a, axis=-1, keepdims=True)
    e = jnp.exp(a)
    denom = jnp.dot(jnp.dot(e, m1, preferred_element_type=jnp.float32), m2,
                    preferred_element_type=jnp.float32)
    denom = jnp.maximum(denom, 1e-30)           # guard approx-reciprocal blowup
    p = e * pl.reciprocal(denom, approx=True)   # divide on the EUP slot

    attn_out = (p * v).astype(jnp.bfloat16)     # bf16 MXU input for proj

    # Output projection + bias + residual (residual uses the f32 x tile).
    y = jnp.dot(attn_out, wp_ref[...], preferred_element_type=jnp.float32)
    o_ref[...] = (x.astype(jnp.float32) + y + bp_ref[...]).astype(o_ref.dtype)


# --------------------------------------------------------------- wrapper ----

def cont_fused_rows(x2d, w_a, b_a, w_proj, b_proj, m1, m2, *, inv_head_dim,
                    block_rows=None):
    """Row-tiled, pipelined fused ConT kernel over an (N, D) activation slab."""
    n_rows, d_model = x2d.shape
    assert w_a.shape == (d_model, 2 * d_model)
    assert w_proj.shape == (d_model, d_model)

    vmem_limit = _default_vmem_limit_bytes()
    if block_rows is None:
        block_rows = _auto_block_rows(d_model, vmem_limit)

    # Guarantee >= 2 row tiles (megacore sharding on v7x + pipeline overlap),
    # multiple of 8 sublanes, and of 128 rows when large (clean MXU M-tiling).
    half = _round_up(pl.cdiv(n_rows, 2), 8)
    tm = max(8, min(_round_up(block_rows, 8), half))
    if tm >= 128:
        tm = (tm // 128) * 128
    n_pad = _round_up(n_rows, tm)
    xp = x2d if n_pad == n_rows else jnp.pad(x2d, ((0, n_pad - n_rows), (0, 0)))

    # NOTE: for best store throughput d_model should be a multiple of 128
    # lanes; the kernel is still correct (masked stores) when it is not.
    resident_spec = pl.BlockSpec(memory_space=pltpu.MemorySpace.VMEM)

    out = pl.pallas_call(
        partial(_cont_fused_kernel, inv_head_dim=inv_head_dim),
        out_shape=jax.ShapeDtypeStruct((n_pad, d_model), x2d.dtype),
        grid=(n_pad // tm,),
        in_specs=[
            pl.BlockSpec((tm, d_model), lambda i: (i, 0)),   # x rows (pipelined)
            resident_spec,                                   # W_a  (bf16, resident)
            resident_spec,                                   # b_a  (f32)
            resident_spec,                                   # W_proj (bf16, resident)
            resident_spec,                                   # b_proj (f32)
            resident_spec,                                   # M1 (D, Hp)
            resident_spec,                                   # M2 (Hp, D)
        ],
        out_specs=pl.BlockSpec((tm, d_model), lambda i: (i, 0)),
        compiler_params=pltpu.CompilerParams(
            dimension_semantics=("parallel",),               # shard row tiles across TCs
            vmem_limit_bytes=vmem_limit,
        ),
    )(xp, w_a, b_a, w_proj, b_proj, m1, m2)

    return out if n_pad == n_rows else out[:n_rows]


def cont_forward(x, params, *, local_size, num_heads, block_rows=None):
    """Optimized ConT forward.  x: [B, S, D] -> [B, S, D].

    The hierarchical binary-clustering permutation of the reference module
    gathers q/k/v with one permutation and un-gathers the purely per-position
    attention output with its inverse, so it cancels exactly and is elided
    here (see `cont_forward_reference`).  `local_size` only parameterizes the
    elided clustering, so it does not affect the result.
    """
    B, S, D = x.shape
    H = num_heads
    assert D % H == 0
    head_dim = D // H
    scale = head_dim ** (-0.5)
    del local_size  # only affects the (elided) clustering permutation

    # Fold the q-k subtraction and the scale into the weights:
    #   a = x @ (scale*(Wq - Wk)) + scale*(bq - bk),   v = x @ Wv + bv.
    w_qkv, b_qkv = params["w_qkv"], params["b_qkv"]
    w_q, w_k, w_v = w_qkv[:, :D], w_qkv[:, D:2 * D], w_qkv[:, 2 * D:]
    b_q, b_k, b_v = b_qkv[:D], b_qkv[D:2 * D], b_qkv[2 * D:]
    w_a = jnp.concatenate([(w_q - w_k) * scale, w_v], axis=1).astype(jnp.bfloat16)
    b_a = jnp.concatenate([(b_q - b_k) * scale, b_v]).astype(jnp.float32
                                                             ).reshape(1, 2 * D)
    w_p = params["w_proj"].astype(jnp.bfloat16)
    b_p = params["b_proj"].astype(jnp.float32).reshape(1, D)

    # Thin lane<->head scatter/broadcast matrices (factorized block-diagonal
    # mask): per-head sums cost 2*D*Hp MACs instead of D^2.  Hp padded to 8
    # sublanes; dummy heads are all-zero so they contribute nothing.
    Hp = _round_up(H, 8)
    lane_head = np.arange(D) // head_dim
    m1_np = (lane_head[:, None] == np.arange(Hp)[None, :]).astype(np.float32)
    m1 = jnp.asarray(m1_np)          # (D, Hp)
    m2 = jnp.asarray(m1_np.T)        # (Hp, D)

    out2d = cont_fused_rows(
        x.reshape(B * S, D), w_a, b_a, w_p, b_p, m1, m2,
        inv_head_dim=1.0 / head_dim, block_rows=block_rows)
    return out2d.reshape(B, S, D)


# ----------------------------------------------- literal jnp reference ------

def _l2_normalize(x, axis=-1, eps=1e-12):
    n = jnp.sqrt(jnp.sum(x * x, axis=axis, keepdims=True))
    return x / jnp.maximum(n, eps)


def cont_forward_reference(x, params, *, local_size, num_heads):
    """Literal jnp port of the PyTorch ConT.forward (clustering included).
    The data-dependent argsort/gather clustering has no clean Pallas
    equivalent; it is kept in plain JAX purely to verify the optimized path."""
    B, S, D = x.shape
    H = num_heads
    d = D // H
    ls = local_size
    nl = S // ls
    scale = d ** (-0.5)

    qkv = x.reshape(B * S, D) @ params["w_qkv"] + params["b_qkv"]
    qkv = qkv.reshape(B, S, 3, H, d).transpose(2, 0, 3, 1, 4)            # (3,B,H,S,d)

    q_pre = qkv[0].reshape(B * H, S, d).transpose(0, 2, 1)               # (BH,d,S)
    ntimes = int(math.log(nl, 2))
    q_idx_last = jnp.broadcast_to(jnp.arange(S)[None, :], (B * H, S))
    for _ in range(ntimes):
        bh, dd, n = q_pre.shape
        q_avg = q_pre.reshape(bh, dd, 2, n // 2).mean(axis=-1)           # (bh,d,2)
        q_avg = _l2_normalize(q_avg.transpose(0, 2, 1), axis=-1)         # (bh,2,d)
        q_norm = _l2_normalize(q_pre.transpose(0, 2, 1), axis=-1)        # (bh,n,d)
        q_scores = jnp.sum(
            (q_norm[:, :, None, :] - q_avg[:, None, :, :]) ** 2, axis=-1)
        q_ratio = (q_scores[:, :, 0] + 1.0) / (q_scores[:, :, 1] + 1.0)
        q_idx = jnp.argsort(q_ratio, axis=-1)
        q_idx_last = jnp.take_along_axis(q_idx_last, q_idx, axis=-1).reshape(bh * 2, n // 2)
        q_pre = jnp.take_along_axis(q_pre, q_idx[:, None, :], axis=-1)
        q_pre = q_pre.reshape(bh, dd, 2, n // 2).transpose(0, 2, 1, 3).reshape(bh * 2, dd, n // 2)

    q_idx = q_idx_last.reshape(B, H, S)
    q_idx_rev = jnp.argsort(q_idx, axis=-1)

    gather_idx = jnp.broadcast_to(q_idx[None, :, :, :, None], qkv.shape)
    qkv_pre = jnp.take_along_axis(qkv, gather_idx, axis=3)
    qkv_pre = qkv_pre.reshape(3, B, H, nl, ls, d).transpose(0, 1, 3, 2, 4, 5)
    qkv_pre = qkv_pre.reshape(3, B * nl, H, ls, d)
    q, k, v = qkv_pre[0], qkv_pre[1], qkv_pre[2]

    attn = jax.nn.softmax((q - k) * scale, axis=-1)
    out = attn * v                                                       # (B*nl,H,ls,d)
    out = out.reshape(B, nl, H, ls, d).transpose(0, 2, 4, 1, 3).reshape(B, H, d, S)

    rev_idx = jnp.broadcast_to(q_idx_rev[:, :, None, :], out.shape)
    res = jnp.take_along_axis(out, rev_idx, axis=-1).reshape(B, D, S).transpose(0, 2, 1)

    res = res.reshape(B * S, D) @ params["w_proj"] + params["b_proj"]
    return x + res.reshape(B, S, D)


# ------------------------------------------------------------------- main ---

if __name__ == "__main__":
    # dim=32, num_heads=4, local_size=4  ->  B=2 clouds, S=16 points, D=32 ch.
    B, S, D = 2, 16, 32
    H, LS = 4, 4

    key = jax.random.PRNGKey(0)
    k1, k2, k3, k4, kx = jax.random.split(key, 5)
    params = {
        "w_qkv": jax.random.normal(k1, (D, 3 * D), jnp.float32) * 0.05,
        "b_qkv": jax.random.normal(k2, (3 * D,), jnp.float32) * 0.01,
        "w_proj": jax.random.normal(k3, (D, D), jnp.float32) * 0.05,
        "b_proj": jax.random.normal(k4, (D,), jnp.float32) * 0.01,
    }
    x = jax.random.normal(kx, (B, S, D), jnp.float32)

    # Auto tiling: B*S = 32 rows is clamped to two 16-row tiles, so the toy
    # shape still exercises a multi-step pipelined / parallel grid.
    fwd = jax.jit(partial(cont_forward, local_size=LS, num_heads=H))
    y = fwd(x, params)
    jax.block_until_ready(y)
    assert y.shape == (B, S, D)
    assert bool(jnp.all(jnp.isfinite(y)))

    # Verify against the literal jnp port of the PyTorch module (clustering,
    # gather and un-gather included).
    y_ref = jax.jit(partial(cont_forward_reference, local_size=LS, num_heads=H))(x, params)
    jax.block_until_ready(y_ref)
    max_err = float(np.max(np.abs(np.asarray(y) - np.asarray(y_ref))))
    assert np.allclose(np.asarray(y), np.asarray(y_ref), rtol=2e-2, atol=2e-2), max_err

    print("KERNEL_OK")
</pallas_src>

<mosaic_0001>
module attributes {stable_mosaic.version = 11 : i64} {
  func.func @_cont_fused_kernel(%arg0: i32, %arg1: memref<16x32xf32, #tpu.memory_space<vmem>>, %arg2: memref<32x64xbf16, #tpu.memory_space<vmem>>, %arg3: memref<1x64xf32, #tpu.memory_space<vmem>>, %arg4: memref<32x32xbf16, #tpu.memory_space<vmem>>, %arg5: memref<1x32xf32, #tpu.memory_space<vmem>>, %arg6: memref<32x8xf32, #tpu.memory_space<vmem>>, %arg7: memref<8x32xf32, #tpu.memory_space<vmem>>, %arg8: memref<16x32xf32, #tpu.memory_space<vmem>>) attributes {dimension_semantics = [#tpu.dimension_semantics<parallel>], iteration_bounds = array<i64: 2>, scalar_prefetch = 0 : i64, scratch_operands = 0 : i64, tpu.core_type = #tpu.core_type<tc>, window_params = [{transform_indices = @transform_0, window_bounds = array<i64: 16, 32>}, {pipeline_mode = #tpu.pipeline_mode<synchronous>, transform_indices = @transform_1, window_bounds = array<i64: 32, 64>}, {pipeline_mode = #tpu.pipeline_mode<synchronous>, transform_indices = @transform_2, window_bounds = array<i64: 1, 64>}, {pipeline_mode = #tpu.pipeline_mode<synchronous>, transform_indices = @transform_3, window_bounds = array<i64: 32, 32>}, {pipeline_mode = #tpu.pipeline_mode<synchronous>, transform_indices = @transform_4, window_bounds = array<i64: 1, 32>}, {pipeline_mode = #tpu.pipeline_mode<synchronous>, transform_indices = @transform_5, window_bounds = array<i64: 32, 8>}, {pipeline_mode = #tpu.pipeline_mode<synchronous>, transform_indices = @transform_6, window_bounds = array<i64: 8, 32>}, {transform_indices = @transform_7, window_bounds = array<i64: 16, 32>}]} {
    %c0 = arith.constant 0 : index
    %c0_0 = arith.constant 0 : index
    %0 = vector.load %arg1[%c0, %c0_0] : memref<16x32xf32, #tpu.memory_space<vmem>>, vector<16x32xf32>
    %1 = arith.truncf %0 : vector<16x32xf32> to vector<16x32xbf16>
    %c0_1 = arith.constant 0 : index
    %c0_2 = arith.constant 0 : index
    %2 = vector.load %arg2[%c0_1, %c0_2] : memref<32x64xbf16, #tpu.memory_space<vmem>>, vector<32x64xbf16>
    %cst = arith.constant dense<0.000000e+00> : vector<16x64xf32>
    %3 = tpu.matmul %1, %2, %cst {dimension_numbers = #tpu.dot_dimension_numbers<[1], [0], [0], [1], [0, 0, 1, 1], [], []>} : vector<16x32xbf16>, vector<32x64xbf16>, vector<16x64xf32> -> vector<16x64xf32>
    %c0_3 = arith.constant 0 : index
    %c0_4 = arith.constant 0 : index
    %4 = vector.load %arg3[%c0_3, %c0_4] : memref<1x64xf32, #tpu.memory_space<vmem>>, vector<1x64xf32>
    %5 = vector.broadcast %4 : vector<1x64xf32> to vector<16x64xf32>
    %6 = arith.addf %3, %5 : vector<16x64xf32>
    %7 = vector.extract_strided_slice %6 {offsets = [0, 0], sizes = [16, 32], strides = [1, 1]} : vector<16x64xf32> to vector<16x32xf32>
    %8 = vector.extract_strided_slice %6 {offsets = [0, 32], sizes = [16, 32], strides = [1, 1]} : vector<16x64xf32> to vector<16x32xf32>
    %c0_5 = arith.constant 0 : index
    %c0_6 = arith.constant 0 : index
    %9 = vector.load %arg6[%c0_5, %c0_6] : memref<32x8xf32, #tpu.memory_space<vmem>>, vector<32x8xf32>
    %c0_7 = arith.constant 0 : index
    %c0_8 = arith.constant 0 : index
    %10 = vector.load %arg7[%c0_7, %c0_8] : memref<8x32xf32, #tpu.memory_space<vmem>>, vector<8x32xf32>
    %cst_9 = arith.constant dense<0.000000e+00> : vector<16x8xf32>
    %11 = tpu.matmul %7, %9, %cst_9 {dimension_numbers = #tpu.dot_dimension_numbers<[1], [0], [0], [1], [0, 0, 1, 1], [], []>} : vector<16x32xf32>, vector<32x8xf32>, vector<16x8xf32> -> vector<16x8xf32>
    %cst_10 = arith.constant 1.250000e-01 : f32
    %12 = vector.broadcast %cst_10 : f32 to vector<16x8xf32>
    %13 = arith.mulf %11, %12 : vector<16x8xf32>
    %cst_11 = arith.constant dense<0.000000e+00> : vector<16x32xf32>
    %14 = tpu.matmul %13, %10, %cst_11 {dimension_numbers = #tpu.dot_dimension_numbers<[1], [0], [0], [1], [0, 0, 1, 1], [], []>} : vector<16x8xf32>, vector<8x32xf32>, vector<16x32xf32> -> vector<16x32xf32>
    %15 = arith.subf %7, %14 : vector<16x32xf32>
    %cst_12 = arith.constant dense<0xFF800000> : vector<16xf32>
    %16 = vector.multi_reduction <maximumf>, %15, %cst_12 [1] : vector<16x32xf32> to vector<16xf32>
    %17 = vector.shape_cast %16 : vector<16xf32> to vector<16x1xf32>
    %18 = vector.broadcast %17 : vector<16x1xf32> to vector<16x32xf32>
    %19 = arith.subf %15, %18 : vector<16x32xf32>
    %20 = math.exp %19 : vector<16x32xf32>
    %cst_13 = arith.constant dense<0.000000e+00> : vector<16x8xf32>
    %21 = tpu.matmul %20, %9, %cst_13 {dimension_numbers = #tpu.dot_dimension_numbers<[1], [0], [0], [1], [0, 0, 1, 1], [], []>} : vector<16x32xf32>, vector<32x8xf32>, vector<16x8xf32> -> vector<16x8xf32>
    %cst_14 = arith.constant dense<0.000000e+00> : vector<16x32xf32>
    %22 = tpu.matmul %21, %10, %cst_14 {dimension_numbers = #tpu.dot_dimension_numbers<[1], [0], [0], [1], [0, 0, 1, 1], [], []>} : vector<16x8xf32>, vector<8x32xf32>, vector<16x32xf32> -> vector<16x32xf32>
    %cst_15 = arith.constant 1.000000e-30 : f32
    %23 = vector.broadcast %cst_15 : f32 to vector<16x32xf32>
    %24 = arith.maximumf %22, %23 : vector<16x32xf32>
    %25 = tpu.reciprocal %24 {approx = true} : vector<16x32xf32> -> vector<16x32xf32>
    %26 = arith.mulf %20, %25 : vector<16x32xf32>
    %27 = arith.mulf %26, %8 : vector<16x32xf32>
    %28 = arith.truncf %27 : vector<16x32xf32> to vector<16x32xbf16>
    %c0_16 = arith.constant 0 : index
    %c0_17 = arith.constant 0 : index
    %29 = vector.load %arg4[%c0_16, %c0_17] : memref<32x32xbf16, #tpu.memory_space<vmem>>, vector<32x32xbf16>
    %cst_18 = arith.constant dense<0.000000e+00> : vector<16x32xf32>
    %30 = tpu.matmul %28, %29, %cst_18 {dimension_numbers = #tpu.dot_dimension_numbers<[1], [0], [0], [1], [0, 0, 1, 1], [], []>} : vector<16x32xbf16>, vector<32x32xbf16>, vector<16x32xf32> -> vector<16x32xf32>
    %31 = arith.addf %0, %30 : vector<16x32xf32>
    %c0_19 = arith.constant 0 : index
    %c0_20 = arith.constant 0 : index
    %32 = vector.load %arg5[%c0_19, %c0_20] : memref<1x32xf32, #tpu.memory_space<vmem>>, vector<1x32xf32>
    %33 = vector.broadcast %32 : vector<1x32xf32> to vector<16x32xf32>
    %34 = arith.addf %31, %33 : vector<16x32xf32>
    %c0_21 = arith.constant 0 : index
    %c0_22 = arith.constant 0 : index
    %35 = vector.load %arg8[%c0_21, %c0_22] : memref<16x32xf32, #tpu.memory_space<vmem>>, vector<16x32xf32>
    tpu.vector_store %arg8[%c0_21, %c0_22], %34 {strides = array<i32>} : memref<16x32xf32, #tpu.memory_space<vmem>>, vector<16x32xf32>,
    return
  }
  func.func @transform_0(%arg0: i32) -> (i32, i32) {
    %c0_i32 = arith.constant 0 : i32
    %c0_i32_0 = arith.constant 0 : i32
    return %arg0, %c0_i32 : i32, i32
  }
  func.func @transform_1(%arg0: i32) -> (i32, i32) {
    %c0_i32 = arith.constant 0 : i32
    %c0_i32_0 = arith.constant 0 : i32
    %c0_i32_1 = arith.constant 0 : i32
    return %c0_i32, %c0_i32_0 : i32, i32
  }
  func.func @transform_2(%arg0: i32) -> (i32, i32) {
    %c0_i32 = arith.constant 0 : i32
    %c0_i32_0 = arith.constant 0 : i32
    %c0_i32_1 = arith.constant 0 : i32
    return %c0_i32, %c0_i32_0 : i32, i32
  }
  func.func @transform_3(%arg0: i32) -> (i32, i32) {
    %c0_i32 = arith.constant 0 : i32
    %c0_i32_0 = arith.constant 0 : i32
    %c0_i32_1 = arith.constant 0 : i32
    return %c0_i32, %c0_i32_0 : i32, i32
  }
  func.func @transform_4(%arg0: i32) -> (i32, i32) {
    %c0_i32 = arith.constant 0 : i32
    %c0_i32_0 = arith.constant 0 : i32
    %c0_i32_1 = arith.constant 0 : i32
    return %c0_i32, %c0_i32_0 : i32, i32
  }
  func.func @transform_5(%arg0: i32) -> (i32, i32) {
    %c0_i32 = arith.constant 0 : i32
    %c0_i32_0 = arith.constant 0 : i32
    %c0_i32_1 = arith.constant 0 : i32
    return %c0_i32, %c0_i32_0 : i32, i32
  }
  func.func @transform_6(%arg0: i32) -> (i32, i32) {
    %c0_i32 = arith.constant 0 : i32
    %c0_i32_0 = arith.constant 0 : i32
    %c0_i32_1 = arith.constant 0 : i32
    return %c0_i32, %c0_i32_0 : i32, i32
  }
  func.func @transform_7(%arg0: i32) -> (i32, i32) {
    %c0_i32 = arith.constant 0 : i32
    %c0_i32_0 = arith.constant 0 : i32
    return %arg0, %c0_i32 : i32, i32
  }
}

</mosaic_0001>

<llo_original>
// kernel: cont_forward.1
$region0: #{cont_forward.1}
  #allocation0 [shape = 'u32[]', space=smem, size = 0x4, offset = 0x4, fixed_abs, tag = 'smem constant byte address 0x4 - core index']
  #allocation1 [shape = 'u32[144,128]{1,0:T(1,128)}', space=vmem, size = 0x12000, scoped, tag = 'internal scratch']
  %s0 = inlined_call_operand.vmem [shape: f32[32,32], index: 0, kind: input, shape index: {}]
  %s1 = inlined_call_operand.vmem [shape: bf16[32,64], index: 1, kind: input, shape index: {}]
  %s2 = inlined_call_operand.vmem [shape: f32[1,64], index: 2, kind: input, shape index: {}]
  %s3 = inlined_call_operand.vmem [shape: bf16[32,32], index: 3, kind: input, shape index: {}]
  %s4 = inlined_call_operand.vmem [shape: f32[1,32], index: 4, kind: input, shape index: {}]
  %s5 = inlined_call_operand.vmem [shape: f32[32,8], index: 5, kind: input, shape index: {}]
  %s6 = inlined_call_operand.vmem [shape: f32[8,32], index: 6, kind: input, shape index: {}]
  %s7 = inlined_call_operand.hbm [shape: f32[32,32], index: 7, kind: output, shape index: {}]
  %s8 = sld [smem:[#allocation0]]
  $region61: #{cont_forward.1} parent=0
    _
  %s10 = ssub.s32 1, %s8
  %s11 = scalar_select 0, %s10, %s8
  $region1: #{cont_forward.1} parent=0
    #allocation2 [shape = 'u8[16384]{0}', space=vmem, size = 0x4000, scoped, tag = 'output window, operand 0']
    #allocation3 [shape = 's32[2]{0}', space=sflag, size = 0x8, scoped, tag = 'scoped memory for cont_forward.1']
    %12 = vsyncpa [#allocation3], 0
    %s13 = scalar_lea.sflag [#allocation3], 1
    %14 = vsyncpa %s13, 0
    loop: start=0, step=1, limit=4
    $region2: #{cont_forward.1} parent=1 // loop_pre_header
      _
    $region3: #{cont_forward.1} parent=1 // loop_header
      %s16 = sphi 0, %s20
      %p17 = scmp.ge.s32.totalorder %s16, 4
      %s26 = sphi 0, %s28
      %s29 = sphi 0, %s26
      %s30 = sphi 0, %s29
      %s46 = sphi 0, %s30
      %s50 = sphi 0, %s50
      %s52 = sphi 0, %s50
      %s53 = sphi 0, %s52
      %s67 = sphi 0, %s53
      %s71 = sphi 0, %s71
      %s73 = sphi 0, %s71
      %s74 = sphi 0, %s73
      %s88 = sphi 0, %s74
      %s92 = sphi 0, %s92
      %s94 = sphi 0, %s92
      %s95 = sphi 0, %s94
      %s109 = sphi 0, %s95
      %s113 = sphi 0, %s113
      %s115 = sphi 0, %s113
      %s116 = sphi 0, %s115
      %s130 = sphi 0, %s116
      %s134 = sphi 0, %s134
      %s136 = sphi 0, %s134
      %s137 = sphi 0, %s136
      %s151 = sphi 0, %s137
      %s155 = sphi 0, %s155
      %s157 = sphi 0, %s155
      %s158 = sphi 0, %s157
      %s172 = sphi 0, %s158
      %s178 = sphi 0, %s180
      %s181 = sphi 0, %s178
      %s182 = sphi 0, %s181
      %s198 = sphi 0, %s182
    $region4: #{cont_forward.1} parent=1 // loop_header_branch
      %19 = sbr.rel (%p17) target = $region8
    $region5: #{cont_forward.1} parent=1 // loop_body
      %s21 = ssub.s32 %s16, 1
      %s22 = ssub.s32 %s16, 2
      %s23 = sadd.s32 %s16, 1
      %s24 = ssub.s32 %s16, %s23
      %p25 = scmp.eq.s32.totalorder %s24, 0
      %s27 = sadd.s32 %s26, 1
      %s28 = scalar_select %p25, %s26, %s27
      %p31 = pneg %p25
      %p32 = scmp.eq.s32.totalorder %s16, 1
      %p33 = por %p31, %p32
      %p34 = scmp.ne.s32.totalorder %s26, %s29
      %p35 = scmp.eq.s32.totalorder %s16, 0
      %p36 = por %p34, %p35
      %p37 = scmp.ne.s32.totalorder %s26, %s29
      %p38 = scmp.eq.s32.totalorder %s21, 1
      %p39 = por %p37, %p38
      %p40 = scmp.ne.s32.totalorder %s29, %s30
      %p41 = scmp.eq.s32.totalorder %s21, 0
      %p42 = por %p40, %p41
      %p43 = scmp.ne.s32.totalorder %s29, %s30
      %p44 = scmp.eq.s32.totalorder %s22, 1
      %p45 = por %p43, %p44
      %p47 = scmp.ne.s32.totalorder %s30, %s46
      %p48 = scmp.eq.s32.totalorder %s22, 0
      %p49 = por %p47, %p48
      %s51 = sadd.s32 %s50, 1
      %p54 = scmp.eq.s32.totalorder %s16, 1
      %p55 = scmp.ne.s32.totalorder %s50, %s52
      %p56 = scmp.eq.s32.totalorder %s16, 0
      %p57 = por %p55, %p56
      %p58 = scmp.ne.s32.totalorder %s50, %s52
      %p59 = scmp.eq.s32.totalorder %s21, 1
      %p60 = por %p58, %p59
      %p61 = scmp.ne.s32.totalorder %s52, %s53
      %p62 = scmp.eq.s32.totalorder %s21, 0
      %p63 = por %p61, %p62
      %p64 = scmp.ne.s32.totalorder %s52, %s53
      %p65 = scmp.eq.s32.totalorder %s22, 1
      %p66 = por %p64, %p65
      %p68 = scmp.ne.s32.totalorder %s53, %s67
      %p69 = scmp.eq.s32.totalorder %s22, 0
      %p70 = por %p68, %p69
      %s72 = sadd.s32 %s71, 1
      %p75 = scmp.eq.s32.totalorder %s16, 1
      %p76 = scmp.ne.s32.totalorder %s71, %s73
      %p77 = scmp.eq.s32.totalorder %s16, 0
      %p78 = por %p76, %p77
      %p79 = scmp.ne.s32.totalorder %s71, %s73
      %p80 = scmp.eq.s32.totalorder %s21, 1
      %p81 = por %p79, %p80
      %p82 = scmp.ne.s32.totalorder %s73, %s74
      %p83 = scmp.eq.s32.totalorder %s21, 0
      %p84 = por %p82, %p83
      %p85 = scmp.ne.s32.totalorder %s73, %s74
      %p86 = scmp.eq.s32.totalorder %s22, 1
      %p87 = por %p85, %p86
      %p89 = scmp.ne.s32.totalorder %s74, %s88
      %p90 = scmp.eq.s32.totalorder %s22, 0
      %p91 = por %p89, %p90
      %s93 = sadd.s32 %s92, 1
      %p96 = scmp.eq.s32.totalorder %s16, 1
      %p97 = scmp.ne.s32.totalorder %s92, %s94
      %p98 = scmp.eq.s32.totalorder %s16, 0
      %p99 = por %p97, %p98
      %p100 = scmp.ne.s32.totalorder %s92, %s94
      %p101 = scmp.eq.s32.totalorder %s21, 1
      %p102 = por %p100, %p101
      %p103 = scmp.ne.s32.totalorder %s94, %s95
      %p104 = scmp.eq.s32.totalorder %s21, 0
      %p105 = por %p103, %p104
      %p106 = scmp.ne.s32.totalorder %s94, %s95
      %p107 = scmp.eq.s32.totalorder %s22, 1
      %p108 = por %p106, %p107
      %p110 = scmp.ne.s32.totalorder %s95, %s109
      %p111 = scmp.eq.s32.totalorder %s22, 0
      %p112 = por %p110, %p111
      %s114 = sadd.s32 %s113, 1
      %p117 = scmp.eq.s32.totalorder %s16, 1
      %p118 = scmp.ne.s32.totalorder %s113, %s115
      %p119 = scmp.eq.s32.totalorder %s16, 0
      %p120 = por %p118, %p119
      %p121 = scmp.ne.s32.totalorder %s113, %s115
      %p122 = scmp.eq.s32.totalorder %s21, 1
      %p123 = por %p121, %p122
      %p124 = scmp.ne.s32.totalorder %s115, %s116
      %p125 = scmp.eq.s32.totalorder %s21, 0
      %p126 = por %p124, %p125
      %p127 = scmp.ne.s32.totalorder %s115, %s116
      %p128 = scmp.eq.s32.totalorder %s22, 1
      %p129 = por %p127, %p128
      %p131 = scmp.ne.s32.totalorder %s116, %s130
      %p132 = scmp.eq.s32.totalorder %s22, 0
      %p133 = por %p131, %p132
      %s135 = sadd.s32 %s134, 1
      %p138 = scmp.eq.s32.totalorder %s16, 1
      %p139 = scmp.ne.s32.totalorder %s134, %s136
      %p140 = scmp.eq.s32.totalorder %s16, 0
      %p141 = por %p139, %p140
      %p142 = scmp.ne.s32.totalorder %s134, %s136
      %p143 = scmp.eq.s32.totalorder %s21, 1
      %p144 = por %p142, %p143
      %p145 = scmp.ne.s32.totalorder %s136, %s137
      %p146 = scmp.eq.s32.totalorder %s21, 0
      %p147 = por %p145, %p146
      %p148 = scmp.ne.s32.totalorder %s136, %s137
      %p149 = scmp.eq.s32.totalorder %s22, 1
      %p150 = por %p148, %p149
      %p152 = scmp.ne.s32.totalorder %s137, %s151
      %p153 = scmp.eq.s32.totalorder %s22, 0
      %p154 = por %p152, %p153
      %s156 = sadd.s32 %s155, 1
      %p159 = scmp.eq.s32.totalorder %s16, 1
      %p160 = scmp.ne.s32.totalorder %s155, %s157
      %p161 = scmp.eq.s32.totalorder %s16, 0
      %p162 = por %p160, %p161
      %p163 = scmp.ne.s32.totalorder %s155, %s157
      %p164 = scmp.eq.s32.totalorder %s21, 1
      %p165 = por %p163, %p164
      %p166 = scmp.ne.s32.totalorder %s157, %s158
      %p167 = scmp.eq.s32.totalorder %s21, 0
      %p168 = por %p166, %p167
      %p169 = scmp.ne.s32.totalorder %s157, %s158
      %p170 = scmp.eq.s32.totalorder %s22, 1
      %p171 = por %p169, %p170
      %p173 = scmp.ne.s32.totalorder %s158, %s172
      %p174 = scmp.eq.s32.totalorder %s22, 0
      %p175 = por %p173, %p174
      %s176 = ssub.s32 %s16, %s23
      %p177 = scmp.eq.s32.totalorder %s176, 0
      %s179 = sadd.s32 %s178, 1
      %s180 = scalar_select %p177, %s178, %s179
      %p183 = pneg %p177
      %p184 = scmp.eq.s32.totalorder %s16, 1
      %p185 = por %p183, %p184
      %p186 = scmp.ne.s32.totalorder %s178, %s181
      %p187 = scmp.eq.s32.totalorder %s16, 0
      %p188 = por %p186, %p187
      %p189 = scmp.ne.s32.totalorder %s178, %s181
      %p190 = scmp.eq.s32.totalorder %s21, 1
      %p191 = por %p189, %p190
      %p192 = scmp.ne.s32.totalorder %s181, %s182
      %p193 = scmp.eq.s32.totalorder %s21, 0
      %p194 = por %p192, %p193
      %p195 = scmp.ne.s32.totalorder %s181, %s182
      %p196 = scmp.eq.s32.totalorder %s22, 1
      %p197 = por %p195, %p196
      %p199 = scmp.ne.s32.totalorder %s182, %s198
      %p200 = scmp.eq.s32.totalorder %s22, 0
      %p201 = por %p199, %p200
      %p202 = scmp.le.s32.totalorder 1, %s16
      %p203 = scmp.lt.s32.totalorder %s16, 3
      %p204 = pnand %p202, %p203
      %p205 = pneg %p204
      // Predicated region
      $region9: #{cont_forward.1} parent=5 // pred_check
        _
      $region10: #{cont_forward.1} parent=5 // pred_check_branch
        %207 = sbr.rel (%p204) target = $region12
      $region11: #{cont_forward.1} parent=5 // pred_region
        %s208 = ssub.s32 %s16, 1
        // Predicated region
        $region13: #{cont_forward.1} parent=11 // pred_check
          %p209 = pneg %p63
        $region14: #{cont_forward.1} parent=11 // pred_check_branch
          %211 = sbr.rel (%p209) target = $region16
        $region15: #{cont_forward.1} parent=11 // pred_region
          _
        $region16: #{cont_forward.1} parent=11 // pred_fallthru
          _
        // Predicated region
        $region17: #{cont_forward.1} parent=11 // pred_check
          %p212 = pneg %p84
        $region18: #{cont_forward.1} parent=11 // pred_check_branch
          %214 = sbr.rel (%p212) target = $region20
        $region19: #{cont_forward.1} parent=11 // pred_region
          _
        $region20: #{cont_forward.1} parent=11 // pred_fallthru
          _
        // Predicated region
        $region21: #{cont_forward.1} parent=11 // pred_check
          %p215 = pneg %p105
        $region22: #{cont_forward.1} parent=11 // pred_check_branch
          %217 = sbr.rel (%p215) target = $region24
        $region23: #{cont_forward.1} parent=11 // pred_region
          _
        $region24: #{cont_forward.1} parent=11 // pred_fallthru
          _
        // Predicated region
        $region25: #{cont_forward.1} parent=11 // pred_check
          %p218 = pneg %p126
        $region26: #{cont_forward.1} parent=11 // pred_check_branch
          %220 = sbr.rel (%p218) target = $region28
        $region27: #{cont_forward.1} parent=11 // pred_region
          _
        $region28: #{cont_forward.1} parent=11 // pred_fallthru
          _
        // Predicated region
        $region29: #{cont_forward.1} parent=11 // pred_check
          %p221 = pneg %p147
        $region30: #{cont_forward.1} parent=11 // pred_check_branch
          %223 = sbr.rel (%p221) target = $region32
        $region31: #{cont_forward.1} parent=11 // pred_region
          _
        $region32: #{cont_forward.1} parent=11 // pred_fallthru
          _
        // Predicated region
        $region33: #{cont_forward.1} parent=11 // pred_check
          %p224 = pneg %p168
        $region34: #{cont_forward.1} parent=11 // pred_check_branch
          %226 = sbr.rel (%p224) target = $region36
        $region35: #{cont_forward.1} parent=11 // pred_region
          _
        $region36: #{cont_forward.1} parent=11 // pred_fallthru
          _
      $region12: #{cont_forward.1} parent=5 // pred_fallthru
        _
      %p227 = scmp.lt.s32.totalorder %s16, 2
      // Predicated region
      $region37: #{cont_forward.1} parent=5 // pred_check
        %p228 = pneg %p227
      $region38: #{cont_forward.1} parent=5 // pred_check_branch
        %230 = sbr.rel (%p228) target = $region40
      $region39: #{cont_forward.1} parent=5 // pred_region
        // Predicated region
        $region41: #{cont_forward.1} parent=39 // pred_check
          %p231 = pneg %p36
        $region42: #{cont_forward.1} parent=39 // pred_check_branch
          %233 = sbr.rel (%p231) target = $region44
        $region43: #{cont_forward.1} parent=39 // pred_region
          %s234 = smul.u32 2, %s16
          %p235 = scmp.lt.s32.totalorder %s234, 3
          %s236 = scalar_select %p235, %s234, 3
          %s237 = smul.addr %s236, 8
          %s238 = scalar_lea.vmem %s0, %s237
          %s239 = smul.u32 2, %s16
        $region44: #{cont_forward.1} parent=39 // pred_fallthru
          _
      $region40: #{cont_forward.1} parent=5 // pred_fallthru
        _
      %p240 = scmp.le.s32.totalorder 1, %s16
      %p241 = scmp.lt.s32.totalorder %s16, 3
      %p242 = pnand %p240, %p241
      %p243 = pneg %p242
      // Predicated region
      $region45: #{cont_forward.1} parent=5 // pred_check
        _
      $region46: #{cont_forward.1} parent=5 // pred_check_branch
        %245 = sbr.rel (%p242) target = $region48
      $region47: #{cont_forward.1} parent=5 // pred_region
        %s246 = ssub.s32 %s16, 1
        %s247 = smul.u32 2, %s21
        %p248 = scmp.lt.s32.totalorder %s247, 3
        %s249 = scalar_select %p248, %s247, 3
        %s250 = smul.addr %s249, 8
        %s251 = scalar_lea.vmem %s0, %s250
        %p252 = pneg %p42
        %p253 = pneg %p39
        %p254 = pneg %p63
        %p255 = pneg %p60
        %p256 = pneg %p84
        %p257 = pneg %p81
        %p258 = pneg %p105
        %p259 = pneg %p102
        %p260 = pneg %p126
        %p261 = pneg %p123
        %p262 = pneg %p147
        %p263 = pneg %p144
        %p264 = pneg %p168
        %p265 = pneg %p165
        %p266 = pneg %p194
        %p267 = pneg %p191
        %s268 = sand.u32 %s181, 1
        %s269 = scalar_lea.sflag [#allocation3], %s268
        %s270 = sand.u32 %s181, 1
        %s271 = smul.addr %s270, 16
        %s272 = scalar_lea.vmem [#allocation2], %s271
        %s273 = smul.u32 2, %s21
        %p274 = scmp.lt.s32.totalorder %s273, 3
        %s275 = scalar_select %p274, %s273, 3
        %s276 = smul.addr %s275, 8
        %s277 = scalar_lea.vmem %s0, %s276
        %s278 = smul.u32 2, %s21
        %s279 = smul.u32 2, %s21
        %v281 = vld [vmem:[%s277] sm:$0xff]
        %v282 = vld [vmem:[%s277 + $0x8] sm:$0xff]
        %v283 = vpack.c.bf16 %v282, %v281
        %v284 = vld [vmem:[%s1] sm:$0xf]
        %v285 = vld [vmem:[%s1 + $0x4] sm:$0xf]
        %v286 = vld [vmem:[%s1 + $0x8] sm:$0xf]
        %v287 = vld [vmem:[%s1 + $0xc] sm:$0xf]
        %v288 = vld [vmem:[%s2] sm:$0x1]
        %v290 = vlaneseq
        %v291 = vshrl.u32 %v290, 7
        %v292 = vsub.s32 0, %v291
        %v293 = vrot.slane %v288, %v292
        %v299 = vunpack.c.l.b16 %v284
        %v300 = vunpack.c.l.b16 %v285
        %v301 = vunpack.c.l.b16 %v286
        %v302 = vunpack.c.l.b16 %v287
        %v303 = vpack.c.b16 %v300, %v299
        %v304 = vpack.c.b16 %v302, %v301
        %vm307 = vcmask 261120
        %v309 = vsel %vm307, %v283, 0
        %311 = vmatprep.subr.bf16.mxu0 0
        %312 = vmatpush1.bf16.msra.mxu0 0
        %313 = vmatprep.subr.bf16.mxu0 0
        %314 = vmatpush1.bf16.msra.mxu0 0
        %315 = vmatprep.subr.bf16.mxu0 0
        %316 = vmatpush1.bf16.msra.mxu0 0
        %317 = vmatprep.subr.bf16.mxu0 0
        %318 = vmatpush1.bf16.msra.mxu0 0
        %319 = vmatprep.subr.bf16.mxu0 0
        %320 = vmatpush1.bf16.msra.mxu0 0
        %321 = vmatprep.subr.bf16.mxu0 0
        %322 = vmatpush1.bf16.msra.mxu0 0
        %323 = vmatprep.subr.bf16.mxu0 0
        %324 = vmatpush1.bf16.msra.mxu0 %v304
        %325 = vmatprep.subr.bf16.mxu0 0
        %326 = vmatpush1.bf16.msra.mxu0 %v303
        %327 = vmatprep.subr.bf16.mxu0 0
        %328 = vmatpush2.bf16.msra.mxu0 0
        %329 = vmatprep.subr.bf16.mxu0 0
        %330 = vmatpush2.bf16.msra.mxu0 0
        %331 = vmatprep.subr.bf16.mxu0 0
        %332 = vmatpush2.bf16.msra.mxu0 0
        %333 = vmatprep.subr.bf16.mxu0 0
        %334 = vmatpush2.bf16.msra.mxu0 0
        %335 = vmatprep.subr.bf16.mxu0 0
        %336 = vmatpush2.bf16.msra.mxu0 0
        %337 = vmatprep.subr.bf16.mxu0 0
        %338 = vmatpush2.bf16.msra.mxu0 0
        %339 = vmatprep.subr.bf16.mxu0 0
        %340 = vmatpush2.bf16.msra.mxu0 0
        %341 = vmatprep.subr.bf16.mxu0 0
        %342 = vmatpush2.bf16.msra.mxu0 0
        %343 = vmatprep.mubr.bf16.mxu0 0
        %344 = vmatmul.mubr.bf16.gmra.mxu0 %v309
        %v345 = vpop.f32.mrf.mxu0
        %v346 = vadd.f32 %v293, %v345
        %v347 = vpop.f32.mrf.mxu0
        %v348 = vpop.f32.mrf.mxu0
        %v349 = vadd.f32 %v293, %v348
        %v350 = vpop.f32.mrf.mxu0
        %351 = vdwg.mxu0
        %v352 = vld [vmem:[%s5] sm:$0xff]
        %v353 = vld [vmem:[%s5 + $0x8] sm:$0xff]
        %v354 = vld [vmem:[%s5 + $0x10] sm:$0xff]
        %v355 = vld [vmem:[%s5 + $0x18] sm:$0xff]
        %v356 = vld [vmem:[%s6] sm:$0xff]
        %v358 = vsel %vm307, %v346, 0
        %v361 = vsel %vm307, %v349, 0
        %363 = vmatprep.subr.mxu0 0.0
        %364 = vmatpush1.msra.mxu0 0.0
        %365 = vmatprep.subr.mxu0 0.0
        %366 = vmatpush1.msra.mxu0 0.0
        %367 = vmatprep.subr.mxu0 0.0
        %368 = vmatpush1.msra.mxu0 0.0
        %369 = vmatprep.subr.mxu0 0.0
        %370 = vmatpush1.msra.mxu0 0.0
        %371 = vmatprep.subr.mxu0 0.0
        %372 = vmatpush1.msra.mxu0 0.0
        %373 = vmatprep.subr.mxu0 0.0
        %374 = vmatpush1.msra.mxu0 0.0
        %375 = vmatprep.subr.mxu0 0.0
        %376 = vmatpush1.msra.mxu0 0.0
        %377 = vmatprep.subr.mxu0 0.0
        %378 = vmatpush1.msra.mxu0 0.0
        %379 = vmatprep.subr.mxu0 0.0
        %380 = vmatpush1.msra.mxu0 0.0
        %381 = vmatprep.subr.mxu0 0.0
        %382 = vmatpush1.msra.mxu0 0.0
        %383 = vmatprep.subr.mxu0 0.0
        %384 = vmatpush1.msra.mxu0 0.0
        %385 = vmatprep.subr.mxu0 0.0
        %386 = vmatpush1.msra.mxu0 0.0
        %387 = vmatprep.subr.mxu0 0.0
        %388 = vmatpush1.msra.mxu0 %v355
        %389 = vmatprep.subr.mxu0 0.0
        %390 = vmatpush1.msra.mxu0 %v354
        %391 = vmatprep.subr.mxu0 0.0
        %392 = vmatpush1.msra.mxu0 %v353
        %393 = vmatprep.subr.mxu0 0.0
        %394 = vmatpush1.msra.mxu0 %v352
        %395 = vmatprep.subr.mxu0 0.0
        %396 = vmatpush2.msra.mxu0 0.0
        %397 = vmatprep.subr.mxu0 0.0
        %398 = vmatpush2.msra.mxu0 0.0
        %399 = vmatprep.subr.mxu0 0.0
        %400 = vmatpush2.msra.mxu0 0.0
        %401 = vmatprep.subr.mxu0 0.0
        %402 = vmatpush2.msra.mxu0 0.0
        %403 = vmatprep.subr.mxu0 0.0
        %404 = vmatpush2.msra.mxu0 0.0
        %405 = vmatprep.subr.mxu0 0.0
        %406 = vmatpush2.msra.mxu0 0.0
        %407 = vmatprep.subr.mxu0 0.0
        %408 = vmatpush2.msra.mxu0 0.0
        %409 = vmatprep.subr.mxu0 0.0
        %410 = vmatpush2.msra.mxu0 0.0
        %411 = vmatprep.subr.mxu0 0.0
        %412 = vmatpush2.msra.mxu0 0.0
        %413 = vmatprep.subr.mxu0 0.0
        %414 = vmatpush2.msra.mxu0 0.0
        %415 = vmatprep.subr.mxu0 0.0
        %416 = vmatpush2.msra.mxu0 0.0
        %417 = vmatprep.subr.mxu0 0.0
        %418 = vmatpush2.msra.mxu0 0.0
        %419 = vmatprep.subr.mxu0 0.0
        %420 = vmatpush2.msra.mxu0 0.0
        %421 = vmatprep.subr.mxu0 0.0
        %422 = vmatpush2.msra.mxu0 0.0
        %423 = vmatprep.subr.mxu0 0.0
        %424 = vmatpush2.msra.mxu0 0.0
        %425 = vmatprep.subr.mxu0 0.0
        %426 = vmatpush2.msra.mxu0 0.0
        %427 = vmatprep.mubr.f32.mxu0 0.0
        %428 = vmatmul.mubr.f32.gmra.mxu0 %v358
        %v429 = vpop.f32.mrf.mxu0
        %v430 = vadd.f32 0.0, %v429
        %v431 = vpop.f32.mrf.mxu0
        %432 = vmatprep.mubr.f32.mxu0 0.0
        %433 = vmatmul.mubr.f32.gmra.mxu0 %v361
        %v434 = vpop.f32.mrf.mxu0
        %v435 = vadd.f32 0.0, %v434
        %v436 = vpop.f32.mrf.mxu0
        %437 = vdwg.mxu0
        %v438 = vmul.f32 %v430, 0.125
        %v439 = vmul.f32 %v435, 0.125
        %vm440 = vcmask 64512
        %v442 = vsel %vm440, %v438, 0
        %v445 = vsel %vm440, %v439, 0
        %447 = vmatprep.subr.mxu0 0.0
        %448 = vmatpush1.msra.mxu0 0.0
        %449 = vmatprep.subr.mxu0 0.0
        %450 = vmatpush1.msra.mxu0 0.0
        %451 = vmatprep.subr.mxu0 0.0
        %452 = vmatpush1.msra.mxu0 0.0
        %453 = vmatprep.subr.mxu0 0.0
        %454 = vmatpush1.msra.mxu0 0.0
        %455 = vmatprep.subr.mxu0 0.0
        %456 = vmatpush1.msra.mxu0 0.0
        %457 = vmatprep.subr.mxu0 0.0
        %458 = vmatpush1.msra.mxu0 0.0
        %459 = vmatprep.subr.mxu0 0.0
        %460 = vmatpush1.msra.mxu0 0.0
        %461 = vmatprep.subr.mxu0 0.0
        %462 = vmatpush1.msra.mxu0 0.0
        %463 = vmatprep.subr.mxu0 0.0
        %464 = vmatpush1.msra.mxu0 0.0
        %465 = vmatprep.subr.mxu0 0.0
        %466 = vmatpush1.msra.mxu0 0.0
        %467 = vmatprep.subr.mxu0 0.0
        %468 = vmatpush1.msra.mxu0 0.0
        %469 = vmatprep.subr.mxu0 0.0
        %470 = vmatpush1.msra.mxu0 0.0
        %471 = vmatprep.subr.mxu0 0.0
        %472 = vmatpush1.msra.mxu0 0.0
        %473 = vmatprep.subr.mxu0 0.0
        %474 = vmatpush1.msra.mxu0 0.0
        %475 = vmatprep.subr.mxu0 0.0
        %476 = vmatpush1.msra.mxu0 0.0
        %477 = vmatprep.subr.mxu0 0.0
        %478 = vmatpush1.msra.mxu0 %v356
        %479 = vmatprep.subr.mxu0 0.0
        %480 = vmatpush2.msra.mxu0 0.0
        %481 = vmatprep.subr.mxu0 0.0
        %482 = vmatpush2.msra.mxu0 0.0
        %483 = vmatprep.subr.mxu0 0.0
        %484 = vmatpush2.msra.mxu0 0.0
        %485 = vmatprep.subr.mxu0 0.0
        %486 = vmatpush2.msra.mxu0 0.0
        %487 = vmatprep.subr.mxu0 0.0
        %488 = vmatpush2.msra.mxu0 0.0
        %489 = vmatprep.subr.mxu0 0.0
        %490 = vmatpush2.msra.mxu0 0.0
        %491 = vmatprep.subr.mxu0 0.0
        %492 = vmatpush2.msra.mxu0 0.0
        %493 = vmatprep.subr.mxu0 0.0
        %494 = vmatpush2.msra.mxu0 0.0
        %495 = vmatprep.subr.mxu0 0.0
        %496 = vmatpush2.msra.mxu0 0.0
        %497 = vmatprep.subr.mxu0 0.0
        %498 = vmatpush2.msra.mxu0 0.0
        %499 = vmatprep.subr.mxu0 0.0
        %500 = vmatpush2.msra.mxu0 0.0
        %501 = vmatprep.subr.mxu0 0.0
        %502 = vmatpush2.msra.mxu0 0.0
        %503 = vmatprep.subr.mxu0 0.0
        %504 = vmatpush2.msra.mxu0 0.0
        %505 = vmatprep.subr.mxu0 0.0
        %506 = vmatpush2.msra.mxu0 0.0
        %507 = vmatprep.subr.mxu0 0.0
        %508 = vmatpush2.msra.mxu0 0.0
        %509 = vmatprep.subr.mxu0 0.0
        %510 = vmatpush2.msra.mxu0 0.0
        %511 = vmatprep.mubr.f32.mxu0 0.0
        %512 = vmatmul.mubr.f32.gmra.mxu0 %v442
        %v513 = vpop.f32.mrf.mxu0
        %v514 = vadd.f32 0.0, %v513
        %v515 = vpop.f32.mrf.mxu0
        %516 = vmatprep.mubr.f32.mxu0 0.0
        %517 = vmatmul.mubr.f32.gmra.mxu0 %v445
        %v518 = vpop.f32.mrf.mxu0
        %v519 = vadd.f32 0.0, %v518
        %v520 = vpop.f32.mrf.mxu0
        %521 = vdwg.mxu0
        %v522 = vsub.f32 %v346, %v514
        %v523 = vsub.f32 %v349, %v519
        %v524 = vsel %vm307, %v522, -inf
        %525 = vmax.xlane.f32.xlu0 %v524
        %v526 = vpop.xlane.xlu0 %525
        %v527 = vsel %vm307, %v523, -inf
        %528 = vmax.xlane.f32.xlu0 %v527
        %v529 = vpop.xlane.xlu0 %528
        %v530 = vsub.f32 %v522, %v526
        %v531 = vsub.f32 %v523, %v529
        %v532 = vmul.f32 %v530, 1.442695
        %v533 = vpow.pop %v532
        %v534 = vmul.f32 %v531, 1.442695
        %v535 = vpow.pop %v534
        %v537 = vsel %vm307, %v533, 0
        %v540 = vsel %vm307, %v535, 0
        %542 = vmatprep.subr.mxu0 0.0
        %543 = vmatpush1.msra.mxu0 0.0
        %544 = vmatprep.subr.mxu0 0.0
        %545 = vmatpush1.msra.mxu0 0.0
        %546 = vmatprep.subr.mxu0 0.0
        %547 = vmatpush1.msra.mxu0 0.0
        %548 = vmatprep.subr.mxu0 0.0
        %549 = vmatpush1.msra.mxu0 0.0
        %550 = vmatprep.subr.mxu0 0.0
        %551 = vmatpush1.msra.mxu0 0.0
        %552 = vmatprep.subr.mxu0 0.0
        %553 = vmatpush1.msra.mxu0 0.0
        %554 = vmatprep.subr.mxu0 0.0
        %555 = vmatpush1.msra.mxu0 0.0
        %556 = vmatprep.subr.mxu0 0.0
        %557 = vmatpush1.msra.mxu0 0.0
        %558 = vmatprep.subr.mxu0 0.0
        %559 = vmatpush1.msra.mxu0 0.0
        %560 = vmatprep.subr.mxu0 0.0
        %561 = vmatpush1.msra.mxu0 0.0
        %562 = vmatprep.subr.mxu0 0.0
        %563 = vmatpush1.msra.mxu0 0.0
        %564 = vmatprep.subr.mxu0 0.0
        %565 = vmatpush1.msra.mxu0 0.0
        %566 = vmatprep.subr.mxu0 0.0
        %567 = vmatpush1.msra.mxu0 %v355
        %568 = vmatprep.subr.mxu0 0.0
        %569 = vmatpush1.msra.mxu0 %v354
        %570 = vmatprep.subr.mxu0 0.0
        %571 = vmatpush1.msra.mxu0 %v353
        %572 = vmatprep.subr.mxu0 0.0
        %573 = vmatpush1.msra.mxu0 %v352
        %574 = vmatprep.subr.mxu0 0.0
        %575 = vmatpush2.msra.mxu0 0.0
        %576 = vmatprep.subr.mxu0 0.0
        %577 = vmatpush2.msra.mxu0 0.0
        %578 = vmatprep.subr.mxu0 0.0
        %579 = vmatpush2.msra.mxu0 0.0
        %580 = vmatprep.subr.mxu0 0.0
        %581 = vmatpush2.msra.mxu0 0.0
        %582 = vmatprep.subr.mxu0 0.0
        %583 = vmatpush2.msra.mxu0 0.0
        %584 = vmatprep.subr.mxu0 0.0
        %585 = vmatpush2.msra.mxu0 0.0
        %586 = vmatprep.subr.mxu0 0.0
        %587 = vmatpush2.msra.mxu0 0.0
        %588 = vmatprep.subr.mxu0 0.0
        %589 = vmatpush2.msra.mxu0 0.0
        %590 = vmatprep.subr.mxu0 0.0
        %591 = vmatpush2.msra.mxu0 0.0
        %592 = vmatprep.subr.mxu0 0.0
        %593 = vmatpush2.msra.mxu0 0.0
        %594 = vmatprep.subr.mxu0 0.0
        %595 = vmatpush2.msra.mxu0 0.0
        %596 = vmatprep.subr.mxu0 0.0
        %597 = vmatpush2.msra.mxu0 0.0
        %598 = vmatprep.subr.mxu0 0.0
        %599 = vmatpush2.msra.mxu0 0.0
        %600 = vmatprep.subr.mxu0 0.0
        %601 = vmatpush2.msra.mxu0 0.0
        %602 = vmatprep.subr.mxu0 0.0
        %603 = vmatpush2.msra.mxu0 0.0
        %604 = vmatprep.subr.mxu0 0.0
        %605 = vmatpush2.msra.mxu0 0.0
        %606 = vmatprep.mubr.f32.mxu0 0.0
        %607 = vmatmul.mubr.f32.gmra.mxu0 %v537
        %v608 = vpop.f32.mrf.mxu0
        %v609 = vadd.f32 0.0, %v608
        %v610 = vpop.f32.mrf.mxu0
        %611 = vmatprep.mubr.f32.mxu0 0.0
        %612 = vmatmul.mubr.f32.gmra.mxu0 %v540
        %v613 = vpop.f32.mrf.mxu0
        %v614 = vadd.f32 0.0, %v613
        %v615 = vpop.f32.mrf.mxu0
        %616 = vdwg.mxu0
        %v618 = vsel %vm440, %v609, 0
        %v621 = vsel %vm440, %v614, 0
        %623 = vmatprep.subr.mxu0 0.0
        %624 = vmatpush1.msra.mxu0 0.0
        %625 = vmatprep.subr.mxu0 0.0
        %626 = vmatpush1.msra.mxu0 0.0
        %627 = vmatprep.subr.mxu0 0.0
        %628 = vmatpush1.msra.mxu0 0.0
        %629 = vmatprep.subr.mxu0 0.0
        %630 = vmatpush1.msra.mxu0 0.0
        %631 = vmatprep.subr.mxu0 0.0
        %632 = vmatpush1.msra.mxu0 0.0
        %633 = vmatprep.subr.mxu0 0.0
        %634 = vmatpush1.msra.mxu0 0.0
        %635 = vmatprep.subr.mxu0 0.0
        %636 = vmatpush1.msra.mxu0 0.0
        %637 = vmatprep.subr.mxu0 0.0
        %638 = vmatpush1.msra.mxu0 0.0
        %639 = vmatprep.subr.mxu0 0.0
        %640 = vmatpush1.msra.mxu0 0.0
        %641 = vmatprep.subr.mxu0 0.0
        %642 = vmatpush1.msra.mxu0 0.0
        %643 = vmatprep.subr.mxu0 0.0
        %644 = vmatpush1.msra.mxu0 0.0
        %645 = vmatprep.subr.mxu0 0.0
        %646 = vmatpush1.msra.mxu0 0.0
        %647 = vmatprep.subr.mxu0 0.0
        %648 = vmatpush1.msra.mxu0 0.0
        %649 = vmatprep.subr.mxu0 0.0
        %650 = vmatpush1.msra.mxu0 0.0
        %651 = vmatprep.subr.mxu0 0.0
        %652 = vmatpush1.msra.mxu0 0.0
        %653 = vmatprep.subr.mxu0 0.0
        %654 = vmatpush1.msra.mxu0 %v356
        %655 = vmatprep.subr.mxu0 0.0
        %656 = vmatpush2.msra.mxu0 0.0
        %657 = vmatprep.subr.mxu0 0.0
        %658 = vmatpush2.msra.mxu0 0.0
        %659 = vmatprep.subr.mxu0 0.0
        %660 = vmatpush2.msra.mxu0 0.0
        %661 = vmatprep.subr.mxu0 0.0
        %662 = vmatpush2.msra.mxu0 0.0
        %663 = vmatprep.subr.mxu0 0.0
        %664 = vmatpush2.msra.mxu0 0.0
        %665 = vmatprep.subr.mxu0 0.0
        %666 = vmatpush2.msra.mxu0 0.0
        %667 = vmatprep.subr.mxu0 0.0
        %668 = vmatpush2.msra.mxu0 0.0
        %669 = vmatprep.subr.mxu0 0.0
        %670 = vmatpush2.msra.mxu0 0.0
        %671 = vmatprep.subr.mxu0 0.0
        %672 = vmatpush2.msra.mxu0 0.0
        %673 = vmatprep.subr.mxu0 0.0
        %674 = vmatpush2.msra.mxu0 0.0
        %675 = vmatprep.subr.mxu0 0.0
        %676 = vmatpush2.msra.mxu0 0.0
        %677 = vmatprep.subr.mxu0 0.0
        %678 = vmatpush2.msra.mxu0 0.0
        %679 = vmatprep.subr.mxu0 0.0
        %680 = vmatpush2.msra.mxu0 0.0
        %681 = vmatprep.subr.mxu0 0.0
        %682 = vmatpush2.msra.mxu0 0.0
        %683 = vmatprep.subr.mxu0 0.0
        %684 = vmatpush2.msra.mxu0 0.0
        %685 = vmatprep.subr.mxu0 0.0
        %686 = vmatpush2.msra.mxu0 0.0
        %687 = vmatprep.mubr.f32.mxu0 0.0
        %688 = vmatmul.mubr.f32.gmra.mxu0 %v618
        %v689 = vpop.f32.mrf.mxu0
        %v690 = vadd.f32 0.0, %v689
        %v691 = vpop.f32.mrf.mxu0
        %692 = vmatprep.mubr.f32.mxu0 0.0
        %693 = vmatmul.mubr.f32.gmra.mxu0 %v621
        %v694 = vpop.f32.mrf.mxu0
        %v695 = vadd.f32 0.0, %v694
        %v696 = vpop.f32.mrf.mxu0
        %697 = vdwg.mxu0
        %v698 = vmax.f32 %v690, 1e-30
        %v699 = vmax.f32 %v695, 1e-30
        %v700 = vrcp.pop %v698
        %v701 = vrcp.pop %v699
        %v702 = vmul.f32 %v533, %v700
        %v703 = vmul.f32 %v535, %v701
        %704 = vrot.lane.b32.xlu0 %v346, 96
        %v705 = vpop.permute.xlu0 %704
        %706 = vrot.lane.b32.xlu0 %v349, 96
        %v707 = vpop.permute.xlu0 %706
        %v710 = vmul.f32 %v702, %v705
        %v711 = vmul.f32 %v703, %v707
        %v712 = vpack.c.bf16 %v711, %v710
        %v713 = vld [vmem:[%s3] sm:$0xf]
        %v714 = vld [vmem:[%s3 + $0x4] sm:$0xf]
        %v715 = vld [vmem:[%s3 + $0x8] sm:$0xf]
        %v716 = vld [vmem:[%s3 + $0xc] sm:$0xf]
        %v721 = vunpack.c.l.b16 %v713
        %v722 = vunpack.c.l.b16 %v714
        %v723 = vunpack.c.l.b16 %v715
        %v724 = vunpack.c.l.b16 %v716
        %v725 = vpack.c.b16 %v722, %v721
        %v726 = vpack.c.b16 %v724, %v723
        %v730 = vsel %vm307, %v712, 0
        %732 = vmatprep.subr.bf16.mxu0 0
        %733 = vmatpush1.bf16.msra.mxu0 0
        %734 = vmatprep.subr.bf16.mxu0 0
        %735 = vmatpush1.bf16.msra.mxu0 0
        %736 = vmatprep.subr.bf16.mxu0 0
        %737 = vmatpush1.bf16.msra.mxu0 0
        %738 = vmatprep.subr.bf16.mxu0 0
        %739 = vmatpush1.bf16.msra.mxu0 0
        %740 = vmatprep.subr.bf16.mxu0 0
        %741 = vmatpush1.bf16.msra.mxu0 0
        %742 = vmatprep.subr.bf16.mxu0 0
        %743 = vmatpush1.bf16.msra.mxu0 0
        %744 = vmatprep.subr.bf16.mxu0 0
        %745 = vmatpush1.bf16.msra.mxu0 %v726
        %746 = vmatprep.subr.bf16.mxu0 0
        %747 = vmatpush1.bf16.msra.mxu0 %v725
        %748 = vmatprep.subr.bf16.mxu0 0
        %749 = vmatpush2.bf16.msra.mxu0 0
        %750 = vmatprep.subr.bf16.mxu0 0
        %751 = vmatpush2.bf16.msra.mxu0 0
        %752 = vmatprep.subr.bf16.mxu0 0
        %753 = vmatpush2.bf16.msra.mxu0 0
        %754 = vmatprep.subr.bf16.mxu0 0
        %755 = vmatpush2.bf16.msra.mxu0 0
        %756 = vmatprep.subr.bf16.mxu0 0
        %757 = vmatpush2.bf16.msra.mxu0 0
        %758 = vmatprep.subr.bf16.mxu0 0
        %759 = vmatpush2.bf16.msra.mxu0 0
        %760 = vmatprep.subr.bf16.mxu0 0
        %761 = vmatpush2.bf16.msra.mxu0 0
        %762 = vmatprep.subr.bf16.mxu0 0
        %763 = vmatpush2.bf16.msra.mxu0 0
        %764 = vmatprep.mubr.bf16.mxu0 0
        %765 = vmatmul.mubr.bf16.gmra.mxu0 %v730
        %v766 = vpop.f32.mrf.mxu0
        %v767 = vadd.f32 0.0, %v766
        %v768 = vpop.f32.mrf.mxu0
        %v769 = vpop.f32.mrf.mxu0
        %v770 = vadd.f32 0.0, %v769
        %v771 = vpop.f32.mrf.mxu0
        %772 = vdwg.mxu0
        %v773 = vadd.f32 %v281, %v767
        %v774 = vadd.f32 %v282, %v770
        %v775 = vld [vmem:[%s4] sm:$0x1]
        %v777 = vlaneseq
        %v778 = vshrl.u32 %v777, 7
        %v779 = vsub.s32 0, %v778
        %v780 = vrot.slane %v775, %v779
        %v782 = vadd.f32 %v773, %v780
        %v783 = vadd.f32 %v774, %v780
        %784 = vst.msk [vmem:[%s272] sm:$0xff] %vm307, %v782
        %785 = vst.msk [vmem:[%s272 + $0x8] sm:$0xff] %vm307, %v783
        %s786 = sand.u32 %s181, 1
        %s787 = scalar_lea.sflag [#allocation3], %s786
        %s788 = sand.u32 %s181, 1
        %s789 = smul.addr %s788, 16
        %s790 = scalar_lea.vmem [#allocation2], %s789
        // Predicated region
        $region49: #{cont_forward.1} parent=47 // pred_check
          %p791 = pneg %p191
        $region50: #{cont_forward.1} parent=47 // pred_check_branch
          %793 = sbr.rel (%p791) target = $region52
        $region51: #{cont_forward.1} parent=47 // pred_region
          %s794 = smul.u32 2, %s21
          %s796 = ssub.s32 256, 256
          %797 = vsyncadd %s787, %s796
          %s798 = smul.addr %s794, 128
          %s799 = scalar_lea.hbm %s7, %s798
          %s800 = sshll.u32 %s790, 4
          %s801 = int_to_ptr.vmem [resolvable:$true] %s800
          %806 = dma.vmem_to_hbm [thread:$0]  %s801, 256, %s799, %s787, 128, 128, 8
        $region52: #{cont_forward.1} parent=47 // pred_fallthru
          _
      $region48: #{cont_forward.1} parent=5 // pred_fallthru
        _
      %p807 = scmp.le.s32.totalorder 2, %s16
      // Predicated region
      $region53: #{cont_forward.1} parent=5 // pred_check
        %p808 = pneg %p807
      $region54: #{cont_forward.1} parent=5 // pred_check_branch
        %810 = sbr.rel (%p808) target = $region56
      $region55: #{cont_forward.1} parent=5 // pred_region
        %s811 = ssub.s32 %s16, 2
        // Predicated region
        $region57: #{cont_forward.1} parent=55 // pred_check
          %p812 = pneg %p197
        $region58: #{cont_forward.1} parent=55 // pred_check_branch
          %814 = sbr.rel (%p812) target = $region60
        $region59: #{cont_forward.1} parent=55 // pred_region
          %s815 = sand.u32 %s182, 1
          %s816 = scalar_lea.sflag [#allocation3], %s815
          %s817 = sand.u32 %s182, 1
          %s818 = smul.addr %s817, 16
          %s819 = scalar_lea.vmem [#allocation2], %s818
          %820 = dma.done %s816, 256
        $region60: #{cont_forward.1} parent=55 // pred_fallthru
          _
      $region56: #{cont_forward.1} parent=5 // pred_fallthru
        _
    $region6: #{cont_forward.1} parent=1 // loop_footer
      %s20 = sadd.s32 1, %s16
    $region7: #{cont_forward.1} parent=1 // loop_footer_branch
      %15 = sbr.rel target = $region3
    $region8: #{cont_forward.1} parent=1 // loop_exit
      _
    %821 = vsyncpa [#allocation3], 1
    %s822 = scalar_lea.sflag [#allocation3], 1
    %823 = vsyncpa %s822, 1

</llo_original>
